<compile_context>
chip_gen: v7x
topology: tpu7x:2x2x1
jax: 0.10.0
libtpu: 0.0.40
codegen_flags: <defaults>
</compile_context>

<pallas_src>
import functools

import jax
import jax.numpy as jnp
from jax.experimental import pallas as pl
from jax.experimental.pallas import tpu as pltpu


# ------------------------------ helpers -----------------------------------

def _round_up(x, m):
    return ((x + m - 1) // m) * m


def _cdiv(a, b):
    return -(-a // b)


# Conservative pipeline working-set budget: fits v7x's 64 MiB physical VMEM
# (v5e/v6e have 128 MiB) with headroom for compiler scratch.
_VMEM_BUDGET = 40 * 1024 * 1024


# ----------------------------- Pallas kernel -------------------------------

def _make_fused_mlp_kernel(num_hidden):
    """Builds the fused (Linear->ReLU)*H -> Linear -> log_softmax kernel.

    Ref order: x_ref, w0, b0, ..., w_{H-1}, b_{H-1}, w_out, b_out, o_ref
      - x block is bf16 (pure MXU operand; DMA'd at half width)
      - weights are (in, out) bf16 (pre-transposed, pre-cast)
      - biases  are (1, out)  f32
      - output logits lane dim is pre-padded to a multiple of 128
    """
    def kernel(*refs):
        x_ref = refs[0]
        o_ref = refs[-1]
        params = refs[1:-1]

        h = x_ref[...]                               # already bf16
        for i in range(num_hidden):
            w = params[2 * i][...]                   # (in, out) bf16
            b = params[2 * i + 1][...]               # (1, out)  f32
            y = jnp.dot(h, w, preferred_element_type=jnp.float32) + b
            y = jnp.maximum(y, 0.0)                  # ReLU in f32 (VPU)
            # dropout(p=0.2): eval-mode identity
            # TODO(synk): train-mode stochastic dropout (pltpu.prng_*).
            # bf16 only as the next matmul operand; f32 accumulation keeps
            # error well inside the 5e-2 check for these depths/widths.
            h = y.astype(jnp.bfloat16)

        w_o = params[2 * num_hidden][...]            # (in, out_pad) bf16
        b_o = params[2 * num_hidden + 1][...]        # (1, out_pad)  f32, pad = -1e30
        z = jnp.dot(h, w_o, preferred_element_type=jnp.float32) + b_o

        m = jnp.max(z, axis=1, keepdims=True)        # padded lanes are -1e30
        lse = m + jnp.log(jnp.sum(jnp.exp(z - m), axis=1, keepdims=True))
        o_ref[...] = z - lse                         # log_softmax (dense store)

    return kernel


# --------------------------- param preparation -----------------------------

def init_classifier_params(key, input_size, hidden_layers, output_size):
    """Deterministic PyTorch-like init: U(-1/sqrt(fan_in), 1/sqrt(fan_in)).

    Returns PyTorch-layout params: list of (w(out,in), b(out,)) + output pair.
    """
    sizes = [input_size] + list(hidden_layers)
    params = []
    for h_in, h_out in zip(sizes[:-1], sizes[1:]):
        key, kw, kb = jax.random.split(key, 3)
        bound = 1.0 / jnp.sqrt(h_in)
        w = jax.random.uniform(kw, (h_out, h_in), jnp.float32, -bound, bound)
        b = jax.random.uniform(kb, (h_out,), jnp.float32, -bound, bound)
        params.append((w, b))
    key, kw, kb = jax.random.split(key, 3)
    bound = 1.0 / jnp.sqrt(sizes[-1])
    w_out = jax.random.uniform(kw, (output_size, sizes[-1]), jnp.float32, -bound, bound)
    b_out = jax.random.uniform(kb, (output_size,), jnp.float32, -bound, bound)
    return params, (w_out, b_out)


def prepare_params(hidden_params, output_params):
    """One-time prep: transpose to (in,out), cast weights to bf16, pad logits.

    Done once outside the per-forward path so no transpose/copy/cast is issued
    on every call.
    """
    flat = []
    for w, b in hidden_params:
        flat.append(jnp.transpose(w).astype(jnp.bfloat16))        # (in, out)
        flat.append(b.reshape(1, -1).astype(jnp.float32))         # (1, out)

    w_out, b_out = output_params
    num_classes = w_out.shape[0]
    out_pad = _round_up(num_classes, 128)                         # lane-dense
    w_t = jnp.transpose(w_out).astype(jnp.float32)                # (in, out)
    w_t = jnp.pad(w_t, ((0, 0), (0, out_pad - num_classes)))
    b_row = jnp.pad(b_out.reshape(1, -1).astype(jnp.float32),
                    ((0, 0), (0, out_pad - num_classes)),
                    constant_values=-1e30)                        # mask pad lanes
    flat.append(w_t.astype(jnp.bfloat16))
    flat.append(b_row)
    return tuple(flat), num_classes


# ------------------------------ tiling -------------------------------------

def _choose_tile_b(B, row_bytes, vmem_budget):
    """Pick a batch tile: VMEM-budgeted, multiple of 8 (or == B for tiny B),
    and >= 2 grid steps for B >= 16 so v7x's two TensorCores both get work."""
    cap = min(1024, max(8, (vmem_budget // max(row_bytes, 1)) // 8 * 8))
    if B < 16 and B <= cap:
        return B                                   # single full-extent block
    return max(8, min(cap, _round_up(_cdiv(B, 2), 8)))


# ------------------------------ forward ------------------------------------

@functools.partial(jax.jit, static_argnums=(2, 3))
def classifier_forward(x, params_flat, num_hidden, num_classes):
    """Forward pass mirroring Classifier.forward (eval mode), single kernel."""
    B = x.shape[0]
    # x is only ever a bf16 MXU operand -> DMA it as bf16.  This astype is a
    # no-op when the caller already supplies bf16 (preferred).
    x2d = x.reshape(B, -1).astype(jnp.bfloat16)       # x.view(B, -1)
    in_size = x2d.shape[1]
    out_pad = params_flat[-1].shape[1]

    widths = [int(params_flat[2 * i].shape[1]) for i in range(num_hidden)]
    max_w = max(widths + [out_pad])

    # Per-batch-row VMEM footprint: double-buffered bf16 x block, double-
    # buffered f32 output block, plus f32 working activations/temporaries.
    row_bytes = 2 * in_size * 2 + 2 * out_pad * 4 + 4 * max_w * 4
    params_bytes = sum(int(p.size) * p.dtype.itemsize for p in params_flat)

    tile_b = _choose_tile_b(B, row_bytes, _VMEM_BUDGET - 2 * params_bytes)
    # Ragged last tile: no full-array jnp.pad of x.  OOB rows only affect
    # themselves (row-wise matmul/ReLU/softmax) and are masked on store.
    grid = (_cdiv(B, tile_b),)

    # TODO(synk): for very wide inputs on v7x (64 MiB VMEM), add a K grid axis
    # for the first layer (x block (tile_b, tk) + f32 accumulator scratch)
    # instead of holding the whole in_size row block resident.
    x_spec = pl.BlockSpec((tile_b, in_size), lambda i: (i, 0))
    # Grid-invariant (resident) weight/bias blocks: constant index map, so the
    # pipeline never re-DMAs them; their 2x buffering (~params_bytes extra) is
    # accounted for in the VMEM budget above.
    param_specs = [pl.BlockSpec(p.shape, lambda i: (0, 0))
                   for p in params_flat]
    out_spec = pl.BlockSpec((tile_b, out_pad), lambda i: (i, 0))

    # Explicit scoped-VMEM limit (v5e default is only 16 MiB), sized from the
    # actual working set and capped at v7x's 64 MiB physical VMEM.
    need = 2 * params_bytes + tile_b * row_bytes + (4 << 20)
    vmem_limit = int(min(max(need, 32 << 20), 64 << 20))

    out = pl.pallas_call(
        _make_fused_mlp_kernel(num_hidden),
        out_shape=jax.ShapeDtypeStruct((B, out_pad), jnp.float32),
        grid=grid,
        in_specs=[x_spec] + param_specs,
        out_specs=out_spec,
        compiler_params=pltpu.CompilerParams(
            dimension_semantics=("parallel",),        # shard batch across TCs
            vmem_limit_bytes=vmem_limit),
    )(x2d, *params_flat)

    # NOTE: consumers able to take the lane-padded (B, out_pad) block directly
    # can skip this slice (one fewer HBM pass).
    return out[:, :num_classes]


# ----------------------------- Reference check -----------------------------

def _ref_forward(x, hidden_params, output_params):
    B = x.shape[0]
    h = x.reshape(B, -1).astype(jnp.float32)
    for w, b in hidden_params:
        h = jnp.maximum(h @ w.T + b, 0.0)
    z = h @ output_params[0].T + output_params[1]
    return jax.nn.log_softmax(z, axis=1)


if __name__ == "__main__":
    key = jax.random.PRNGKey(0)
    k_x, k_p = jax.random.split(key)

    # Image-like input (B, C, H, W) = (2, 4, 16, 16) -> input_size 1024
    B, C, H, W = 2, 4, 16, 16
    input_size = C * H * W
    hidden_layers = [128, 64]
    output_size = 10

    x = jax.random.normal(k_x, (B, C, H, W), jnp.float32)
    hidden_params, output_params = init_classifier_params(
        k_p, input_size, hidden_layers, output_size)
    params_flat, num_classes = prepare_params(hidden_params, output_params)

    # Cast once where x is produced: the kernel consumes x only as a bf16
    # MXU operand, so feeding it bf16 halves its HBM DMA inside the kernel.
    x_bf16 = x.astype(jnp.bfloat16)

    out = classifier_forward(x_bf16, params_flat, len(hidden_params), num_classes)
    out = jax.block_until_ready(out)

    ref = _ref_forward(x, hidden_params, output_params)
    assert out.shape == (B, output_size)
    assert bool(jnp.all(jnp.isfinite(out)))
    # bf16 matmul operands (f32 accumulate) -> compare at bf16 tolerance.
    max_diff = float(jnp.max(jnp.abs(out - ref)))
    assert jnp.allclose(out, ref, atol=5e-2, rtol=5e-2), (
        f"mismatch vs reference, max abs diff {max_diff}")

    print("KERNEL_OK")
</pallas_src>

<mosaic_0001>
module attributes {stable_mosaic.version = 11 : i64} {
  func.func @kernel(%arg0: i32, %arg1: memref<2x1024xbf16, #tpu.memory_space<vmem>>, %arg2: memref<1024x128xbf16, #tpu.memory_space<vmem>>, %arg3: memref<1x128xf32, #tpu.memory_space<vmem>>, %arg4: memref<128x64xbf16, #tpu.memory_space<vmem>>, %arg5: memref<1x64xf32, #tpu.memory_space<vmem>>, %arg6: memref<64x128xbf16, #tpu.memory_space<vmem>>, %arg7: memref<1x128xf32, #tpu.memory_space<vmem>>, %arg8: memref<2x128xf32, #tpu.memory_space<vmem>>) attributes {dimension_semantics = [#tpu.dimension_semantics<parallel>], iteration_bounds = array<i64: 1>, scalar_prefetch = 0 : i64, scratch_operands = 0 : i64, tpu.core_type = #tpu.core_type<tc>, window_params = [{transform_indices = @transform_0, window_bounds = array<i64: 2, 1024>}, {pipeline_mode = #tpu.pipeline_mode<synchronous>, transform_indices = @transform_1, window_bounds = array<i64: 1024, 128>}, {pipeline_mode = #tpu.pipeline_mode<synchronous>, transform_indices = @transform_2, window_bounds = array<i64: 1, 128>}, {pipeline_mode = #tpu.pipeline_mode<synchronous>, transform_indices = @transform_3, window_bounds = array<i64: 128, 64>}, {pipeline_mode = #tpu.pipeline_mode<synchronous>, transform_indices = @transform_4, window_bounds = array<i64: 1, 64>}, {pipeline_mode = #tpu.pipeline_mode<synchronous>, transform_indices = @transform_5, window_bounds = array<i64: 64, 128>}, {pipeline_mode = #tpu.pipeline_mode<synchronous>, transform_indices = @transform_6, window_bounds = array<i64: 1, 128>}, {transform_indices = @transform_7, window_bounds = array<i64: 2, 128>}]} {
    %c0 = arith.constant 0 : index
    %c0_0 = arith.constant 0 : index
    %0 = vector.load %arg1[%c0, %c0_0] : memref<2x1024xbf16, #tpu.memory_space<vmem>>, vector<2x1024xbf16>
    %c0_1 = arith.constant 0 : index
    %c0_2 = arith.constant 0 : index
    %1 = vector.load %arg2[%c0_1, %c0_2] : memref<1024x128xbf16, #tpu.memory_space<vmem>>, vector<1024x128xbf16>
    %c0_3 = arith.constant 0 : index
    %c0_4 = arith.constant 0 : index
    %2 = vector.load %arg3[%c0_3, %c0_4] : memref<1x128xf32, #tpu.memory_space<vmem>>, vector<1x128xf32>
    %cst = arith.constant dense<0.000000e+00> : vector<2x128xf32>
    %3 = tpu.matmul %0, %1, %cst {dimension_numbers = #tpu.dot_dimension_numbers<[1], [0], [0], [1], [0, 0, 1, 1], [], []>} : vector<2x1024xbf16>, vector<1024x128xbf16>, vector<2x128xf32> -> vector<2x128xf32>
    %4 = vector.broadcast %2 : vector<1x128xf32> to vector<2x128xf32>
    %5 = arith.addf %3, %4 : vector<2x128xf32>
    %cst_5 = arith.constant 0.000000e+00 : f32
    %6 = vector.broadcast %cst_5 : f32 to vector<2x128xf32>
    %7 = arith.maximumf %5, %6 : vector<2x128xf32>
    %8 = arith.truncf %7 : vector<2x128xf32> to vector<2x128xbf16>
    %c0_6 = arith.constant 0 : index
    %c0_7 = arith.constant 0 : index
    %9 = vector.load %arg4[%c0_6, %c0_7] : memref<128x64xbf16, #tpu.memory_space<vmem>>, vector<128x64xbf16>
    %c0_8 = arith.constant 0 : index
    %c0_9 = arith.constant 0 : index
    %10 = vector.load %arg5[%c0_8, %c0_9] : memref<1x64xf32, #tpu.memory_space<vmem>>, vector<1x64xf32>
    %cst_10 = arith.constant dense<0.000000e+00> : vector<2x64xf32>
    %11 = tpu.matmul %8, %9, %cst_10 {dimension_numbers = #tpu.dot_dimension_numbers<[1], [0], [0], [1], [0, 0, 1, 1], [], []>} : vector<2x128xbf16>, vector<128x64xbf16>, vector<2x64xf32> -> vector<2x64xf32>
    %12 = vector.broadcast %10 : vector<1x64xf32> to vector<2x64xf32>
    %13 = arith.addf %11, %12 : vector<2x64xf32>
    %cst_11 = arith.constant 0.000000e+00 : f32
    %14 = vector.broadcast %cst_11 : f32 to vector<2x64xf32>
    %15 = arith.maximumf %13, %14 : vector<2x64xf32>
    %16 = arith.truncf %15 : vector<2x64xf32> to vector<2x64xbf16>
    %c0_12 = arith.constant 0 : index
    %c0_13 = arith.constant 0 : index
    %17 = vector.load %arg6[%c0_12, %c0_13] : memref<64x128xbf16, #tpu.memory_space<vmem>>, vector<64x128xbf16>
    %c0_14 = arith.constant 0 : index
    %c0_15 = arith.constant 0 : index
    %18 = vector.load %arg7[%c0_14, %c0_15] : memref<1x128xf32, #tpu.memory_space<vmem>>, vector<1x128xf32>
    %cst_16 = arith.constant dense<0.000000e+00> : vector<2x128xf32>
    %19 = tpu.matmul %16, %17, %cst_16 {dimension_numbers = #tpu.dot_dimension_numbers<[1], [0], [0], [1], [0, 0, 1, 1], [], []>} : vector<2x64xbf16>, vector<64x128xbf16>, vector<2x128xf32> -> vector<2x128xf32>
    %20 = vector.broadcast %18 : vector<1x128xf32> to vector<2x128xf32>
    %21 = arith.addf %19, %20 : vector<2x128xf32>
    %cst_17 = arith.constant dense<0xFF800000> : vector<2xf32>
    %22 = vector.multi_reduction <maximumf>, %21, %cst_17 [1] : vector<2x128xf32> to vector<2xf32>
    %23 = vector.shape_cast %22 : vector<2xf32> to vector<2x1xf32>
    %24 = vector.broadcast %23 : vector<2x1xf32> to vector<2x128xf32>
    %25 = arith.subf %21, %24 : vector<2x128xf32>
    %26 = math.exp %25 : vector<2x128xf32>
    %cst_18 = arith.constant dense<0.000000e+00> : vector<2xf32>
    %27 = vector.multi_reduction <add>, %26, %cst_18 [1] : vector<2x128xf32> to vector<2xf32>
    %28 = vector.shape_cast %27 : vector<2xf32> to vector<2x1xf32>
    %29 = math.log %28 : vector<2x1xf32>
    %30 = arith.addf %23, %29 : vector<2x1xf32>
    %31 = vector.broadcast %30 : vector<2x1xf32> to vector<2x128xf32>
    %32 = arith.subf %21, %31 : vector<2x128xf32>
    %c0_19 = arith.constant 0 : index
    %c0_20 = arith.constant 0 : index
    %33 = vector.load %arg8[%c0_19, %c0_20] : memref<2x128xf32, #tpu.memory_space<vmem>>, vector<2x128xf32>
    tpu.vector_store %arg8[%c0_19, %c0_20], %32 {strides = array<i32>} : memref<2x128xf32, #tpu.memory_space<vmem>>, vector<2x128xf32>,
    return
  }
  func.func @transform_0(%arg0: i32) -> (i32, i32) {
    %c0_i32 = arith.constant 0 : i32
    %c0_i32_0 = arith.constant 0 : i32
    return %arg0, %c0_i32 : i32, i32
  }
  func.func @transform_1(%arg0: i32) -> (i32, i32) {
    %c0_i32 = arith.constant 0 : i32
    %c0_i32_0 = arith.constant 0 : i32
    %c0_i32_1 = arith.constant 0 : i32
    return %c0_i32, %c0_i32_0 : i32, i32
  }
  func.func @transform_2(%arg0: i32) -> (i32, i32) {
    %c0_i32 = arith.constant 0 : i32
    %c0_i32_0 = arith.constant 0 : i32
    %c0_i32_1 = arith.constant 0 : i32
    return %c0_i32, %c0_i32_0 : i32, i32
  }
  func.func @transform_3(%arg0: i32) -> (i32, i32) {
    %c0_i32 = arith.constant 0 : i32
    %c0_i32_0 = arith.constant 0 : i32
    %c0_i32_1 = arith.constant 0 : i32
    return %c0_i32, %c0_i32_0 : i32, i32
  }
  func.func @transform_4(%arg0: i32) -> (i32, i32) {
    %c0_i32 = arith.constant 0 : i32
    %c0_i32_0 = arith.constant 0 : i32
    %c0_i32_1 = arith.constant 0 : i32
    return %c0_i32, %c0_i32_0 : i32, i32
  }
  func.func @transform_5(%arg0: i32) -> (i32, i32) {
    %c0_i32 = arith.constant 0 : i32
    %c0_i32_0 = arith.constant 0 : i32
    %c0_i32_1 = arith.constant 0 : i32
    return %c0_i32, %c0_i32_0 : i32, i32
  }
  func.func @transform_6(%arg0: i32) -> (i32, i32) {
    %c0_i32 = arith.constant 0 : i32
    %c0_i32_0 = arith.constant 0 : i32
    %c0_i32_1 = arith.constant 0 : i32
    return %c0_i32, %c0_i32_0 : i32, i32
  }
  func.func @transform_7(%arg0: i32) -> (i32, i32) {
    %c0_i32 = arith.constant 0 : i32
    %c0_i32_0 = arith.constant 0 : i32
    return %arg0, %c0_i32 : i32, i32
  }
}

</mosaic_0001>

<llo_original>
// kernel: classifier_forward.1
$region0: #{classifier_forward.1}
  #allocation0 [shape = 'u32[]', space=smem, size = 0x4, offset = 0x4, fixed_abs, tag = 'smem constant byte address 0x4 - core index']
  #allocation1 [shape = 'u32[144,128]{1,0:T(1,128)}', space=vmem, size = 0x12000, scoped, tag = 'internal scratch']
  %s0 = inlined_call_operand.vmem [shape: bf16[2,1024], index: 0, kind: input, shape index: {}]
  %s1 = inlined_call_operand.hbm [shape: bf16[1024,128], index: 1, kind: input, shape index: {}]
  %s2 = inlined_call_operand.vmem [shape: f32[1,128], index: 2, kind: input, shape index: {}]
  %s3 = inlined_call_operand.vmem [shape: bf16[128,64], index: 3, kind: input, shape index: {}]
  %s4 = inlined_call_operand.vmem [shape: f32[1,64], index: 4, kind: input, shape index: {}]
  %s5 = inlined_call_operand.vmem [shape: bf16[64,128], index: 5, kind: input, shape index: {}]
  %s6 = inlined_call_operand.vmem [shape: f32[1,128], index: 6, kind: input, shape index: {}]
  %s7 = inlined_call_operand.hbm [shape: f32[2,128], index: 7, kind: output, shape index: {}]
  %s8 = sld [smem:[#allocation0]]
  $region42: #{classifier_forward.1} parent=0
    _
  %s10 = ssub.s32 1, %s8
  %s11 = scalar_select 0, %s10, %s8
  $region1: #{classifier_forward.1} parent=0
    #allocation2 [shape = 'u8[262144]{0}', space=vmem, size = 0x40000, scoped, tag = 'input window, operand 1, single buffered']
    #allocation3 [shape = 's32[1]{0}', space=sflag, size = 0x4, scoped, tag = 'scoped memory for classifier_forward.1']
    #allocation4 [shape = 's32[1]{0}', space=sflag, size = 0x4, scoped, tag = 'scoped memory for classifier_forward.1']
    #allocation5 [shape = 'u8[1024]{0}', space=vmem, size = 0x400, scoped, tag = 'output window, operand 0, single buffered']
    %12 = vsyncpa [#allocation3], 0
    %13 = vsyncpa [#allocation4], 0
    // Predicated region
    $region2: #{classifier_forward.1} parent=1 // pred_check
      _
    $region3: #{classifier_forward.1} parent=1 // pred_check_branch
      %15 = sbr.rel (0) target = $region5
    $region4: #{classifier_forward.1} parent=1 // pred_region
      _
    $region5: #{classifier_forward.1} parent=1 // pred_fallthru
      _
    // Predicated region
    $region6: #{classifier_forward.1} parent=1 // pred_check
      _
    $region7: #{classifier_forward.1} parent=1 // pred_check_branch
      %17 = sbr.rel (0) target = $region9
    $region8: #{classifier_forward.1} parent=1 // pred_region
      %s19 = ssub.s32 8192, 8192
      %20 = vsyncadd [#allocation3], %s19
      %s21 = sshll.u32 [#allocation2], 4
      %s22 = int_to_ptr.vmem [resolvable:$true] %s21
      %27 = dma.hbm_to_vmem [thread:$0]  %s1, 8192, %s22, [#allocation3], 64, 64, 4
    $region9: #{classifier_forward.1} parent=1 // pred_fallthru
      _
    // Predicated region
    $region10: #{classifier_forward.1} parent=1 // pred_check
      _
    $region11: #{classifier_forward.1} parent=1 // pred_check_branch
      %29 = sbr.rel (0) target = $region13
    $region12: #{classifier_forward.1} parent=1 // pred_region
      _
    $region13: #{classifier_forward.1} parent=1 // pred_fallthru
      _
    // Predicated region
    $region14: #{classifier_forward.1} parent=1 // pred_check
      _
    $region15: #{classifier_forward.1} parent=1 // pred_check_branch
      %31 = sbr.rel (0) target = $region17
    $region16: #{classifier_forward.1} parent=1 // pred_region
      _
    $region17: #{classifier_forward.1} parent=1 // pred_fallthru
      _
    // Predicated region
    $region18: #{classifier_forward.1} parent=1 // pred_check
      _
    $region19: #{classifier_forward.1} parent=1 // pred_check_branch
      %33 = sbr.rel (0) target = $region21
    $region20: #{classifier_forward.1} parent=1 // pred_region
      _
    $region21: #{classifier_forward.1} parent=1 // pred_fallthru
      _
    // Predicated region
    $region22: #{classifier_forward.1} parent=1 // pred_check
      _
    $region23: #{classifier_forward.1} parent=1 // pred_check_branch
      %35 = sbr.rel (0) target = $region25
    $region24: #{classifier_forward.1} parent=1 // pred_region
      _
    $region25: #{classifier_forward.1} parent=1 // pred_fallthru
      _
    // Predicated region
    $region26: #{classifier_forward.1} parent=1 // pred_check
      _
    $region27: #{classifier_forward.1} parent=1 // pred_check_branch
      %37 = sbr.rel (0) target = $region29
    $region28: #{classifier_forward.1} parent=1 // pred_region
      _
    $region29: #{classifier_forward.1} parent=1 // pred_fallthru
      _
    // Predicated region
    $region30: #{classifier_forward.1} parent=1 // pred_check
      _
    $region31: #{classifier_forward.1} parent=1 // pred_check_branch
      %39 = sbr.rel (0) target = $region33
    $region32: #{classifier_forward.1} parent=1 // pred_region
      %40 = dma.done [#allocation3], 8192
    $region33: #{classifier_forward.1} parent=1 // pred_fallthru
      _
    %v42 = vld [vmem:[%s0] sm:$0xff]
    %v43 = vld [vmem:[#allocation2] sm:$0xf]
    %v44 = vld [vmem:[#allocation2 + $0x4] sm:$0xf]
    %v45 = vld [vmem:[#allocation2 + $0x8] sm:$0xf]
    %v46 = vld [vmem:[#allocation2 + $0xc] sm:$0xf]
    %v47 = vld [vmem:[#allocation2 + $0x10] sm:$0xf]
    %v48 = vld [vmem:[#allocation2 + $0x14] sm:$0xf]
    %v49 = vld [vmem:[#allocation2 + $0x18] sm:$0xf]
    %v50 = vld [vmem:[#allocation2 + $0x1c] sm:$0xf]
    %v51 = vld [vmem:[#allocation2 + $0x20] sm:$0xf]
    %v52 = vld [vmem:[#allocation2 + $0x24] sm:$0xf]
    %v53 = vld [vmem:[#allocation2 + $0x28] sm:$0xf]
    %v54 = vld [vmem:[#allocation2 + $0x2c] sm:$0xf]
    %v55 = vld [vmem:[#allocation2 + $0x30] sm:$0xf]
    %v56 = vld [vmem:[#allocation2 + $0x34] sm:$0xf]
    %v57 = vld [vmem:[#allocation2 + $0x38] sm:$0xf]
    %v58 = vld [vmem:[#allocation2 + $0x3c] sm:$0xf]
    %v59 = vld [vmem:[#allocation2 + $0x40] sm:$0xf]
    %v60 = vld [vmem:[#allocation2 + $0x44] sm:$0xf]
    %v61 = vld [vmem:[#allocation2 + $0x48] sm:$0xf]
    %v62 = vld [vmem:[#allocation2 + $0x4c] sm:$0xf]
    %v63 = vld [vmem:[#allocation2 + $0x50] sm:$0xf]
    %v64 = vld [vmem:[#allocation2 + $0x54] sm:$0xf]
    %v65 = vld [vmem:[#allocation2 + $0x58] sm:$0xf]
    %v66 = vld [vmem:[#allocation2 + $0x5c] sm:$0xf]
    %v67 = vld [vmem:[#allocation2 + $0x60] sm:$0xf]
    %v68 = vld [vmem:[#allocation2 + $0x64] sm:$0xf]
    %v69 = vld [vmem:[#allocation2 + $0x68] sm:$0xf]
    %v70 = vld [vmem:[#allocation2 + $0x6c] sm:$0xf]
    %v71 = vld [vmem:[#allocation2 + $0x70] sm:$0xf]
    %v72 = vld [vmem:[#allocation2 + $0x74] sm:$0xf]
    %v73 = vld [vmem:[#allocation2 + $0x78] sm:$0xf]
    %v74 = vld [vmem:[#allocation2 + $0x7c] sm:$0xf]
    %v75 = vld [vmem:[#allocation2 + $0x80] sm:$0xf]
    %v76 = vld [vmem:[#allocation2 + $0x84] sm:$0xf]
    %v77 = vld [vmem:[#allocation2 + $0x88] sm:$0xf]
    %v78 = vld [vmem:[#allocation2 + $0x8c] sm:$0xf]
    %v79 = vld [vmem:[#allocation2 + $0x90] sm:$0xf]
    %v80 = vld [vmem:[#allocation2 + $0x94] sm:$0xf]
    %v81 = vld [vmem:[#allocation2 + $0x98] sm:$0xf]
    %v82 = vld [vmem:[#allocation2 + $0x9c] sm:$0xf]
    %v83 = vld [vmem:[#allocation2 + $0xa0] sm:$0xf]
    %v84 = vld [vmem:[#allocation2 + $0xa4] sm:$0xf]
    %v85 = vld [vmem:[#allocation2 + $0xa8] sm:$0xf]
    %v86 = vld [vmem:[#allocation2 + $0xac] sm:$0xf]
    %v87 = vld [vmem:[#allocation2 + $0xb0] sm:$0xf]
    %v88 = vld [vmem:[#allocation2 + $0xb4] sm:$0xf]
    %v89 = vld [vmem:[#allocation2 + $0xb8] sm:$0xf]
    %v90 = vld [vmem:[#allocation2 + $0xbc] sm:$0xf]
    %v91 = vld [vmem:[#allocation2 + $0xc0] sm:$0xf]
    %v92 = vld [vmem:[#allocation2 + $0xc4] sm:$0xf]
    %v93 = vld [vmem:[#allocation2 + $0xc8] sm:$0xf]
    %v94 = vld [vmem:[#allocation2 + $0xcc] sm:$0xf]
    %v95 = vld [vmem:[#allocation2 + $0xd0] sm:$0xf]
    %v96 = vld [vmem:[#allocation2 + $0xd4] sm:$0xf]
    %v97 = vld [vmem:[#allocation2 + $0xd8] sm:$0xf]
    %v98 = vld [vmem:[#allocation2 + $0xdc] sm:$0xf]
    %v99 = vld [vmem:[#allocation2 + $0xe0] sm:$0xf]
    %v100 = vld [vmem:[#allocation2 + $0xe4] sm:$0xf]
    %v101 = vld [vmem:[#allocation2 + $0xe8] sm:$0xf]
    %v102 = vld [vmem:[#allocation2 + $0xec] sm:$0xf]
    %v103 = vld [vmem:[#allocation2 + $0xf0] sm:$0xf]
    %v104 = vld [vmem:[#allocation2 + $0xf4] sm:$0xf]
    %v105 = vld [vmem:[#allocation2 + $0xf8] sm:$0xf]
    %v106 = vld [vmem:[#allocation2 + $0xfc] sm:$0xf]
    %v107 = vld [vmem:[#allocation2 + $0x100] sm:$0xf]
    %v108 = vld [vmem:[#allocation2 + $0x104] sm:$0xf]
    %v109 = vld [vmem:[#allocation2 + $0x108] sm:$0xf]
    %v110 = vld [vmem:[#allocation2 + $0x10c] sm:$0xf]
    %v111 = vld [vmem:[#allocation2 + $0x110] sm:$0xf]
    %v112 = vld [vmem:[#allocation2 + $0x114] sm:$0xf]
    %v113 = vld [vmem:[#allocation2 + $0x118] sm:$0xf]
    %v114 = vld [vmem:[#allocation2 + $0x11c] sm:$0xf]
    %v115 = vld [vmem:[#allocation2 + $0x120] sm:$0xf]
    %v116 = vld [vmem:[#allocation2 + $0x124] sm:$0xf]
    %v117 = vld [vmem:[#allocation2 + $0x128] sm:$0xf]
    %v118 = vld [vmem:[#allocation2 + $0x12c] sm:$0xf]
    %v119 = vld [vmem:[#allocation2 + $0x130] sm:$0xf]
    %v120 = vld [vmem:[#allocation2 + $0x134] sm:$0xf]
    %v121 = vld [vmem:[#allocation2 + $0x138] sm:$0xf]
    %v122 = vld [vmem:[#allocation2 + $0x13c] sm:$0xf]
    %v123 = vld [vmem:[#allocation2 + $0x140] sm:$0xf]
    %v124 = vld [vmem:[#allocation2 + $0x144] sm:$0xf]
    %v125 = vld [vmem:[#allocation2 + $0x148] sm:$0xf]
    %v126 = vld [vmem:[#allocation2 + $0x14c] sm:$0xf]
    %v127 = vld [vmem:[#allocation2 + $0x150] sm:$0xf]
    %v128 = vld [vmem:[#allocation2 + $0x154] sm:$0xf]
    %v129 = vld [vmem:[#allocation2 + $0x158] sm:$0xf]
    %v130 = vld [vmem:[#allocation2 + $0x15c] sm:$0xf]
    %v131 = vld [vmem:[#allocation2 + $0x160] sm:$0xf]
    %v132 = vld [vmem:[#allocation2 + $0x164] sm:$0xf]
    %v133 = vld [vmem:[#allocation2 + $0x168] sm:$0xf]
    %v134 = vld [vmem:[#allocation2 + $0x16c] sm:$0xf]
    %v135 = vld [vmem:[#allocation2 + $0x170] sm:$0xf]
    %v136 = vld [vmem:[#allocation2 + $0x174] sm:$0xf]
    %v137 = vld [vmem:[#allocation2 + $0x178] sm:$0xf]
    %v138 = vld [vmem:[#allocation2 + $0x17c] sm:$0xf]
    %v139 = vld [vmem:[#allocation2 + $0x180] sm:$0xf]
    %v140 = vld [vmem:[#allocation2 + $0x184] sm:$0xf]
    %v141 = vld [vmem:[#allocation2 + $0x188] sm:$0xf]
    %v142 = vld [vmem:[#allocation2 + $0x18c] sm:$0xf]
    %v143 = vld [vmem:[#allocation2 + $0x190] sm:$0xf]
    %v144 = vld [vmem:[#allocation2 + $0x194] sm:$0xf]
    %v145 = vld [vmem:[#allocation2 + $0x198] sm:$0xf]
    %v146 = vld [vmem:[#allocation2 + $0x19c] sm:$0xf]
    %v147 = vld [vmem:[#allocation2 + $0x1a0] sm:$0xf]
    %v148 = vld [vmem:[#allocation2 + $0x1a4] sm:$0xf]
    %v149 = vld [vmem:[#allocation2 + $0x1a8] sm:$0xf]
    %v150 = vld [vmem:[#allocation2 + $0x1ac] sm:$0xf]
    %v151 = vld [vmem:[#allocation2 + $0x1b0] sm:$0xf]
    %v152 = vld [vmem:[#allocation2 + $0x1b4] sm:$0xf]
    %v153 = vld [vmem:[#allocation2 + $0x1b8] sm:$0xf]
    %v154 = vld [vmem:[#allocation2 + $0x1bc] sm:$0xf]
    %v155 = vld [vmem:[#allocation2 + $0x1c0] sm:$0xf]
    %v156 = vld [vmem:[#allocation2 + $0x1c4] sm:$0xf]
    %v157 = vld [vmem:[#allocation2 + $0x1c8] sm:$0xf]
    %v158 = vld [vmem:[#allocation2 + $0x1cc] sm:$0xf]
    %v159 = vld [vmem:[#allocation2 + $0x1d0] sm:$0xf]
    %v160 = vld [vmem:[#allocation2 + $0x1d4] sm:$0xf]
    %v161 = vld [vmem:[#allocation2 + $0x1d8] sm:$0xf]
    %v162 = vld [vmem:[#allocation2 + $0x1dc] sm:$0xf]
    %v163 = vld [vmem:[#allocation2 + $0x1e0] sm:$0xf]
    %v164 = vld [vmem:[#allocation2 + $0x1e4] sm:$0xf]
    %v165 = vld [vmem:[#allocation2 + $0x1e8] sm:$0xf]
    %v166 = vld [vmem:[#allocation2 + $0x1ec] sm:$0xf]
    %v167 = vld [vmem:[#allocation2 + $0x1f0] sm:$0xf]
    %v168 = vld [vmem:[#allocation2 + $0x1f4] sm:$0xf]
    %v169 = vld [vmem:[#allocation2 + $0x1f8] sm:$0xf]
    %v170 = vld [vmem:[#allocation2 + $0x1fc] sm:$0xf]
    %v171 = vld [vmem:[%s2] sm:$0x1]
    %v173 = vlaneseq
    %v174 = vshrl.u32 %v173, 7
    %v175 = vsub.s32 0, %v174
    %v176 = vrot.slane %v171, %v175
    %v179 = vcombine.high %v42, %v42
    %v181 = vunpack.c.l.s4 1966171168
    %v182 = vunpack.c.0.s8 %v181
    %v183 = vlaneseq
    %v184 = vshrl.u32 %v183, 7
    %v185 = vsub.s32 %v182, %v184
    %v186 = vrot.slane %v42, %v185
    %v188 = vunpack.c.l.s4 1966171168
    %v189 = vunpack.c.0.s8 %v188
    %v190 = vlaneseq
    %v191 = vshrl.u32 %v190, 7
    %v192 = vsub.s32 %v189, %v191
    %v193 = vrot.slane %v179, %v192
    %v194 = vcombine.high %v186, %v186
    %v195 = vcombine.high %v193, %v193
    %v197 = vunpack.c.l.s4 1966171168
    %v198 = vunpack.c.0.s8 %v197
    %v199 = vlaneseq
    %v200 = vshrl.u32 %v199, 7
    %v201 = vsub.s32 %v198, %v200
    %v202 = vrot.slane %v186, %v201
    %v204 = vunpack.c.l.s4 1966171168
    %v205 = vunpack.c.0.s8 %v204
    %v206 = vlaneseq
    %v207 = vshrl.u32 %v206, 7
    %v208 = vsub.s32 %v205, %v207
    %v209 = vrot.slane %v193, %v208
    %v211 = vunpack.c.l.s4 1966171168
    %v212 = vunpack.c.0.s8 %v211
    %v213 = vlaneseq
    %v214 = vshrl.u32 %v213, 7
    %v215 = vsub.s32 %v212, %v214
    %v216 = vrot.slane %v194, %v215
    %v218 = vunpack.c.l.s4 1966171168
    %v219 = vunpack.c.0.s8 %v218
    %v220 = vlaneseq
    %v221 = vshrl.u32 %v220, 7
    %v222 = vsub.s32 %v219, %v221
    %v223 = vrot.slane %v195, %v222
    %v224 = vcombine.high %v202, %v202
    %v225 = vcombine.high %v209, %v209
    %v226 = vcombine.high %v216, %v216
    %v227 = vcombine.high %v223, %v223
    %v364 = vunpack.c.l.b16 %v43
    %v365 = vunpack.c.l.b16 %v44
    %v366 = vunpack.c.l.b16 %v45
    %v367 = vunpack.c.l.b16 %v46
    %v368 = vunpack.c.l.b16 %v47
    %v369 = vunpack.c.l.b16 %v48
    %v370 = vunpack.c.l.b16 %v49
    %v371 = vunpack.c.l.b16 %v50
    %v372 = vunpack.c.l.b16 %v51
    %v373 = vunpack.c.l.b16 %v52
    %v374 = vunpack.c.l.b16 %v53
    %v375 = vunpack.c.l.b16 %v54
    %v376 = vunpack.c.l.b16 %v55
    %v377 = vunpack.c.l.b16 %v56
    %v378 = vunpack.c.l.b16 %v57
    %v379 = vunpack.c.l.b16 %v58
    %v380 = vunpack.c.l.b16 %v59
    %v381 = vunpack.c.l.b16 %v60
    %v382 = vunpack.c.l.b16 %v61
    %v383 = vunpack.c.l.b16 %v62
    %v384 = vunpack.c.l.b16 %v63
    %v385 = vunpack.c.l.b16 %v64
    %v386 = vunpack.c.l.b16 %v65
    %v387 = vunpack.c.l.b16 %v66
    %v388 = vunpack.c.l.b16 %v67
    %v389 = vunpack.c.l.b16 %v68
    %v390 = vunpack.c.l.b16 %v69
    %v391 = vunpack.c.l.b16 %v70
    %v392 = vunpack.c.l.b16 %v71
    %v393 = vunpack.c.l.b16 %v72
    %v394 = vunpack.c.l.b16 %v73
    %v395 = vunpack.c.l.b16 %v74
    %v396 = vunpack.c.l.b16 %v75
    %v397 = vunpack.c.l.b16 %v76
    %v398 = vunpack.c.l.b16 %v77
    %v399 = vunpack.c.l.b16 %v78
    %v400 = vunpack.c.l.b16 %v79
    %v401 = vunpack.c.l.b16 %v80
    %v402 = vunpack.c.l.b16 %v81
    %v403 = vunpack.c.l.b16 %v82
    %v404 = vunpack.c.l.b16 %v83
    %v405 = vunpack.c.l.b16 %v84
    %v406 = vunpack.c.l.b16 %v85
    %v407 = vunpack.c.l.b16 %v86
    %v408 = vunpack.c.l.b16 %v87
    %v409 = vunpack.c.l.b16 %v88
    %v410 = vunpack.c.l.b16 %v89
    %v411 = vunpack.c.l.b16 %v90
    %v412 = vunpack.c.l.b16 %v91
    %v413 = vunpack.c.l.b16 %v92
    %v414 = vunpack.c.l.b16 %v93
    %v415 = vunpack.c.l.b16 %v94
    %v416 = vunpack.c.l.b16 %v95
    %v417 = vunpack.c.l.b16 %v96
    %v418 = vunpack.c.l.b16 %v97
    %v419 = vunpack.c.l.b16 %v98
    %v420 = vunpack.c.l.b16 %v99
    %v421 = vunpack.c.l.b16 %v100
    %v422 = vunpack.c.l.b16 %v101
    %v423 = vunpack.c.l.b16 %v102
    %v424 = vunpack.c.l.b16 %v103
    %v425 = vunpack.c.l.b16 %v104
    %v426 = vunpack.c.l.b16 %v105
    %v427 = vunpack.c.l.b16 %v106
    %v428 = vunpack.c.l.b16 %v107
    %v429 = vunpack.c.l.b16 %v108
    %v430 = vunpack.c.l.b16 %v109
    %v431 = vunpack.c.l.b16 %v110
    %v432 = vunpack.c.l.b16 %v111
    %v433 = vunpack.c.l.b16 %v112
    %v434 = vunpack.c.l.b16 %v113
    %v435 = vunpack.c.l.b16 %v114
    %v436 = vunpack.c.l.b16 %v115
    %v437 = vunpack.c.l.b16 %v116
    %v438 = vunpack.c.l.b16 %v117
    %v439 = vunpack.c.l.b16 %v118
    %v440 = vunpack.c.l.b16 %v119
    %v441 = vunpack.c.l.b16 %v120
    %v442 = vunpack.c.l.b16 %v121
    %v443 = vunpack.c.l.b16 %v122
    %v444 = vunpack.c.l.b16 %v123
    %v445 = vunpack.c.l.b16 %v124
    %v446 = vunpack.c.l.b16 %v125
    %v447 = vunpack.c.l.b16 %v126
    %v448 = vunpack.c.l.b16 %v127
    %v449 = vunpack.c.l.b16 %v128
    %v450 = vunpack.c.l.b16 %v129
    %v451 = vunpack.c.l.b16 %v130
    %v452 = vunpack.c.l.b16 %v131
    %v453 = vunpack.c.l.b16 %v132
    %v454 = vunpack.c.l.b16 %v133
    %v455 = vunpack.c.l.b16 %v134
    %v456 = vunpack.c.l.b16 %v135
    %v457 = vunpack.c.l.b16 %v136
    %v458 = vunpack.c.l.b16 %v137
    %v459 = vunpack.c.l.b16 %v138
    %v460 = vunpack.c.l.b16 %v139
    %v461 = vunpack.c.l.b16 %v140
    %v462 = vunpack.c.l.b16 %v141
    %v463 = vunpack.c.l.b16 %v142
    %v464 = vunpack.c.l.b16 %v143
    %v465 = vunpack.c.l.b16 %v144
    %v466 = vunpack.c.l.b16 %v145
    %v467 = vunpack.c.l.b16 %v146
    %v468 = vunpack.c.l.b16 %v147
    %v469 = vunpack.c.l.b16 %v148
    %v470 = vunpack.c.l.b16 %v149
    %v471 = vunpack.c.l.b16 %v150
    %v472 = vunpack.c.l.b16 %v151
    %v473 = vunpack.c.l.b16 %v152
    %v474 = vunpack.c.l.b16 %v153
    %v475 = vunpack.c.l.b16 %v154
    %v476 = vunpack.c.l.b16 %v155
    %v477 = vunpack.c.l.b16 %v156
    %v478 = vunpack.c.l.b16 %v157
    %v479 = vunpack.c.l.b16 %v158
    %v480 = vunpack.c.l.b16 %v159
    %v481 = vunpack.c.l.b16 %v160
    %v482 = vunpack.c.l.b16 %v161
    %v483 = vunpack.c.l.b16 %v162
    %v484 = vunpack.c.l.b16 %v163
    %v485 = vunpack.c.l.b16 %v164
    %v486 = vunpack.c.l.b16 %v165
    %v487 = vunpack.c.l.b16 %v166
    %v488 = vunpack.c.l.b16 %v167
    %v489 = vunpack.c.l.b16 %v168
    %v490 = vunpack.c.l.b16 %v169
    %v491 = vunpack.c.l.b16 %v170
    %v492 = vpack.c.b16 %v365, %v364
    %v493 = vpack.c.b16 %v367, %v366
    %v494 = vpack.c.b16 %v369, %v368
    %v495 = vpack.c.b16 %v371, %v370
    %v496 = vpack.c.b16 %v373, %v372
    %v497 = vpack.c.b16 %v375, %v374
    %v498 = vpack.c.b16 %v377, %v376
    %v499 = vpack.c.b16 %v379, %v378
    %v500 = vpack.c.b16 %v381, %v380
    %v501 = vpack.c.b16 %v383, %v382
    %v502 = vpack.c.b16 %v385, %v384
    %v503 = vpack.c.b16 %v387, %v386
    %v504 = vpack.c.b16 %v389, %v388
    %v505 = vpack.c.b16 %v391, %v390
    %v506 = vpack.c.b16 %v393, %v392
    %v507 = vpack.c.b16 %v395, %v394
    %v508 = vpack.c.b16 %v397, %v396
    %v509 = vpack.c.b16 %v399, %v398
    %v510 = vpack.c.b16 %v401, %v400
    %v511 = vpack.c.b16 %v403, %v402
    %v512 = vpack.c.b16 %v405, %v404
    %v513 = vpack.c.b16 %v407, %v406
    %v514 = vpack.c.b16 %v409, %v408
    %v515 = vpack.c.b16 %v411, %v410
    %v516 = vpack.c.b16 %v413, %v412
    %v517 = vpack.c.b16 %v415, %v414
    %v518 = vpack.c.b16 %v417, %v416
    %v519 = vpack.c.b16 %v419, %v418
    %v520 = vpack.c.b16 %v421, %v420
    %v521 = vpack.c.b16 %v423, %v422
    %v522 = vpack.c.b16 %v425, %v424
    %v523 = vpack.c.b16 %v427, %v426
    %v524 = vpack.c.b16 %v429, %v428
    %v525 = vpack.c.b16 %v431, %v430
    %v526 = vpack.c.b16 %v433, %v432
    %v527 = vpack.c.b16 %v435, %v434
    %v528 = vpack.c.b16 %v437, %v436
    %v529 = vpack.c.b16 %v439, %v438
    %v530 = vpack.c.b16 %v441, %v440
    %v531 = vpack.c.b16 %v443, %v442
    %v532 = vpack.c.b16 %v445, %v444
    %v533 = vpack.c.b16 %v447, %v446
    %v534 = vpack.c.b16 %v449, %v448
    %v535 = vpack.c.b16 %v451, %v450
    %v536 = vpack.c.b16 %v453, %v452
    %v537 = vpack.c.b16 %v455, %v454
    %v538 = vpack.c.b16 %v457, %v456
    %v539 = vpack.c.b16 %v459, %v458
    %v540 = vpack.c.b16 %v461, %v460
    %v541 = vpack.c.b16 %v463, %v462
    %v542 = vpack.c.b16 %v465, %v464
    %v543 = vpack.c.b16 %v467, %v466
    %v544 = vpack.c.b16 %v469, %v468
    %v545 = vpack.c.b16 %v471, %v470
    %v546 = vpack.c.b16 %v473, %v472
    %v547 = vpack.c.b16 %v475, %v474
    %v548 = vpack.c.b16 %v477, %v476
    %v549 = vpack.c.b16 %v479, %v478
    %v550 = vpack.c.b16 %v481, %v480
    %v551 = vpack.c.b16 %v483, %v482
    %v552 = vpack.c.b16 %v485, %v484
    %v553 = vpack.c.b16 %v487, %v486
    %v554 = vpack.c.b16 %v489, %v488
    %v555 = vpack.c.b16 %v491, %v490
    %620 = vmatprep.subr.bf16.mxu0 0
    %621 = vmatpush1.bf16.msra.mxu0 %v492
    %622 = vmatprep.subr.bf16.mxu0 0
    %623 = vmatpush1.bf16.msra.mxu0 %v493
    %624 = vmatprep.subr.bf16.mxu0 0
    %625 = vmatpush1.bf16.msra.mxu0 %v494
    %626 = vmatprep.subr.bf16.mxu0 0
    %627 = vmatpush1.bf16.msra.mxu0 %v495
    %628 = vmatprep.subr.bf16.mxu0 0
    %629 = vmatpush1.bf16.msra.mxu0 %v496
    %630 = vmatprep.subr.bf16.mxu0 0
    %631 = vmatpush1.bf16.msra.mxu0 %v497
    %632 = vmatprep.subr.bf16.mxu0 0
    %633 = vmatpush1.bf16.msra.mxu0 %v498
    %634 = vmatprep.subr.bf16.mxu0 0
    %635 = vmatpush1.bf16.msra.mxu0 %v499
    %636 = vmatprep.subr.bf16.mxu0 0
    %637 = vmatpush1.bf16.msra.mxu0 %v500
    %638 = vmatprep.subr.bf16.mxu0 0
    %639 = vmatpush1.bf16.msra.mxu0 %v501
    %640 = vmatprep.subr.bf16.mxu0 0
    %641 = vmatpush1.bf16.msra.mxu0 %v502
    %642 = vmatprep.subr.bf16.mxu0 0
    %643 = vmatpush1.bf16.msra.mxu0 %v503
    %644 = vmatprep.subr.bf16.mxu0 0
    %645 = vmatpush1.bf16.msra.mxu0 %v504
    %646 = vmatprep.subr.bf16.mxu0 0
    %647 = vmatpush1.bf16.msra.mxu0 %v505
    %648 = vmatprep.subr.bf16.mxu0 0
    %649 = vmatpush1.bf16.msra.mxu0 %v506
    %650 = vmatprep.subr.bf16.mxu0 0
    %651 = vmatpush1.bf16.msra.mxu0 %v507
    %652 = vmatprep.mubr.bf16.mxu0 %v216
    %653 = vmatmul.mubr.bf16.gmra.mrb[0].mxu0 %v202
    %v654 = vpop.f32.mrb[0].mxu0
    %v655 = vadd.f32 %v176, %v654
    %v656 = vpop.f32.mrb[0].mxu0
    %v657 = vpop.f32.mrb[0].mxu0
    %v658 = vpop.f32.mrb[0].mxu0
    %659 = vdwg.mxu0
    %660 = vmatprep.subr.bf16.mxu0 0
    %661 = vmatpush1.bf16.msra.mxu0 %v508
    %662 = vmatprep.subr.bf16.mxu0 0
    %663 = vmatpush1.bf16.msra.mxu0 %v509
    %664 = vmatprep.subr.bf16.mxu0 0
    %665 = vmatpush1.bf16.msra.mxu0 %v510
    %666 = vmatprep.subr.bf16.mxu0 0
    %667 = vmatpush1.bf16.msra.mxu0 %v511
    %668 = vmatprep.subr.bf16.mxu0 0
    %669 = vmatpush1.bf16.msra.mxu0 %v512
    %670 = vmatprep.subr.bf16.mxu0 0
    %671 = vmatpush1.bf16.msra.mxu0 %v513
    %672 = vmatprep.subr.bf16.mxu0 0
    %673 = vmatpush1.bf16.msra.mxu0 %v514
    %674 = vmatprep.subr.bf16.mxu0 0
    %675 = vmatpush1.bf16.msra.mxu0 %v515
    %676 = vmatprep.subr.bf16.mxu0 0
    %677 = vmatpush1.bf16.msra.mxu0 %v516
    %678 = vmatprep.subr.bf16.mxu0 0
    %679 = vmatpush1.bf16.msra.mxu0 %v517
    %680 = vmatprep.subr.bf16.mxu0 0
    %681 = vmatpush1.bf16.msra.mxu0 %v518
    %682 = vmatprep.subr.bf16.mxu0 0
    %683 = vmatpush1.bf16.msra.mxu0 %v519
    %684 = vmatprep.subr.bf16.mxu0 0
    %685 = vmatpush1.bf16.msra.mxu0 %v520
    %686 = vmatprep.subr.bf16.mxu0 0
    %687 = vmatpush1.bf16.msra.mxu0 %v521
    %688 = vmatprep.subr.bf16.mxu0 0
    %689 = vmatpush1.bf16.msra.mxu0 %v522
    %690 = vmatprep.subr.bf16.mxu0 0
    %691 = vmatpush1.bf16.msra.mxu0 %v523
    %692 = vmatprep.mubr.bf16.mxu0 %v226
    %693 = vmatmul.mubr.bf16.gmra.mrb[0].mxu0 %v224
    %v694 = vpop.f32.mrb[0].mxu0
    %v695 = vadd.f32 %v655, %v694
    %v696 = vpop.f32.mrb[0].mxu0
    %v697 = vpop.f32.mrb[0].mxu0
    %v698 = vpop.f32.mrb[0].mxu0
    %699 = vdwg.mxu0
    %700 = vmatprep.subr.bf16.mxu0 0
    %701 = vmatpush1.bf16.msra.mxu0 %v524
    %702 = vmatprep.subr.bf16.mxu0 0
    %703 = vmatpush1.bf16.msra.mxu0 %v525
    %704 = vmatprep.subr.bf16.mxu0 0
    %705 = vmatpush1.bf16.msra.mxu0 %v526
    %706 = vmatprep.subr.bf16.mxu0 0
    %707 = vmatpush1.bf16.msra.mxu0 %v527
    %708 = vmatprep.subr.bf16.mxu0 0
    %709 = vmatpush1.bf16.msra.mxu0 %v528
    %710 = vmatprep.subr.bf16.mxu0 0
    %711 = vmatpush1.bf16.msra.mxu0 %v529
    %712 = vmatprep.subr.bf16.mxu0 0
    %713 = vmatpush1.bf16.msra.mxu0 %v530
    %714 = vmatprep.subr.bf16.mxu0 0
    %715 = vmatpush1.bf16.msra.mxu0 %v531
    %716 = vmatprep.subr.bf16.mxu0 0
    %717 = vmatpush1.bf16.msra.mxu0 %v532
    %718 = vmatprep.subr.bf16.mxu0 0
    %719 = vmatpush1.bf16.msra.mxu0 %v533
    %720 = vmatprep.subr.bf16.mxu0 0
    %721 = vmatpush1.bf16.msra.mxu0 %v534
    %722 = vmatprep.subr.bf16.mxu0 0
    %723 = vmatpush1.bf16.msra.mxu0 %v535
    %724 = vmatprep.subr.bf16.mxu0 0
    %725 = vmatpush1.bf16.msra.mxu0 %v536
    %726 = vmatprep.subr.bf16.mxu0 0
    %727 = vmatpush1.bf16.msra.mxu0 %v537
    %728 = vmatprep.subr.bf16.mxu0 0
    %729 = vmatpush1.bf16.msra.mxu0 %v538
    %730 = vmatprep.subr.bf16.mxu0 0
    %731 = vmatpush1.bf16.msra.mxu0 %v539
    %732 = vmatprep.mubr.bf16.mxu0 %v223
    %733 = vmatmul.mubr.bf16.gmra.mrb[0].mxu0 %v209
    %v734 = vpop.f32.mrb[0].mxu0
    %v735 = vadd.f32 %v695, %v734
    %v736 = vpop.f32.mrb[0].mxu0
    %v737 = vpop.f32.mrb[0].mxu0
    %v738 = vpop.f32.mrb[0].mxu0
    %739 = vdwg.mxu0
    %740 = vmatprep.subr.bf16.mxu0 0
    %741 = vmatpush1.bf16.msra.mxu0 %v540
    %742 = vmatprep.subr.bf16.mxu0 0
    %743 = vmatpush1.bf16.msra.mxu0 %v541
    %744 = vmatprep.subr.bf16.mxu0 0
    %745 = vmatpush1.bf16.msra.mxu0 %v542
    %746 = vmatprep.subr.bf16.mxu0 0
    %747 = vmatpush1.bf16.msra.mxu0 %v543
    %748 = vmatprep.subr.bf16.mxu0 0
    %749 = vmatpush1.bf16.msra.mxu0 %v544
    %750 = vmatprep.subr.bf16.mxu0 0
    %751 = vmatpush1.bf16.msra.mxu0 %v545
    %752 = vmatprep.subr.bf16.mxu0 0
    %753 = vmatpush1.bf16.msra.mxu0 %v546
    %754 = vmatprep.subr.bf16.mxu0 0
    %755 = vmatpush1.bf16.msra.mxu0 %v547
    %756 = vmatprep.subr.bf16.mxu0 0
    %757 = vmatpush1.bf16.msra.mxu0 %v548
    %758 = vmatprep.subr.bf16.mxu0 0
    %759 = vmatpush1.bf16.msra.mxu0 %v549
    %760 = vmatprep.subr.bf16.mxu0 0
    %761 = vmatpush1.bf16.msra.mxu0 %v550
    %762 = vmatprep.subr.bf16.mxu0 0
    %763 = vmatpush1.bf16.msra.mxu0 %v551
    %764 = vmatprep.subr.bf16.mxu0 0
    %765 = vmatpush1.bf16.msra.mxu0 %v552
    %766 = vmatprep.subr.bf16.mxu0 0
    %767 = vmatpush1.bf16.msra.mxu0 %v553
    %768 = vmatprep.subr.bf16.mxu0 0
    %769 = vmatpush1.bf16.msra.mxu0 %v554
    %770 = vmatprep.subr.bf16.mxu0 0
    %771 = vmatpush1.bf16.msra.mxu0 %v555
    %772 = vmatprep.mubr.bf16.mxu0 %v227
    %773 = vmatmul.mubr.bf16.gmra.mrb[0].mxu0 %v225
    %v774 = vpop.f32.mrb[0].mxu0
    %v775 = vadd.f32 %v735, %v774
    %v776 = vpop.f32.mrb[0].mxu0
    %v777 = vpop.f32.mrb[0].mxu0
    %v778 = vpop.f32.mrb[0].mxu0
    %779 = vdwg.mxu0
    %v780 = vmax.f32 %v775, 0.0
    %v781 = vpack.c.bf16 %v780, %v780
    %v782 = vld [vmem:[%s3] sm:$0xf]
    %v783 = vld [vmem:[%s3 + $0x4] sm:$0xf]
    %v784 = vld [vmem:[%s3 + $0x8] sm:$0xf]
    %v785 = vld [vmem:[%s3 + $0xc] sm:$0xf]
    %v786 = vld [vmem:[%s3 + $0x10] sm:$0xf]
    %v787 = vld [vmem:[%s3 + $0x14] sm:$0xf]
    %v788 = vld [vmem:[%s3 + $0x18] sm:$0xf]
    %v789 = vld [vmem:[%s3 + $0x1c] sm:$0xf]
    %v790 = vld [vmem:[%s3 + $0x20] sm:$0xf]
    %v791 = vld [vmem:[%s3 + $0x24] sm:$0xf]
    %v792 = vld [vmem:[%s3 + $0x28] sm:$0xf]
    %v793 = vld [vmem:[%s3 + $0x2c] sm:$0xf]
    %v794 = vld [vmem:[%s3 + $0x30] sm:$0xf]
    %v795 = vld [vmem:[%s3 + $0x34] sm:$0xf]
    %v796 = vld [vmem:[%s3 + $0x38] sm:$0xf]
    %v797 = vld [vmem:[%s3 + $0x3c] sm:$0xf]
    %v798 = vld [vmem:[%s4] sm:$0x1]
    %v800 = vlaneseq
    %v801 = vshrl.u32 %v800, 7
    %v802 = vsub.s32 0, %v801
    %v803 = vrot.slane %v798, %v802
    %v821 = vunpack.c.l.b16 %v782
    %v822 = vunpack.c.l.b16 %v783
    %v823 = vunpack.c.l.b16 %v784
    %v824 = vunpack.c.l.b16 %v785
    %v825 = vunpack.c.l.b16 %v786
    %v826 = vunpack.c.l.b16 %v787
    %v827 = vunpack.c.l.b16 %v788
    %v828 = vunpack.c.l.b16 %v789
    %v829 = vunpack.c.l.b16 %v790
    %v830 = vunpack.c.l.b16 %v791
    %v831 = vunpack.c.l.b16 %v792
    %v832 = vunpack.c.l.b16 %v793
    %v833 = vunpack.c.l.b16 %v794
    %v834 = vunpack.c.l.b16 %v795
    %v835 = vunpack.c.l.b16 %v796
    %v836 = vunpack.c.l.b16 %v797
    %v837 = vpack.c.b16 %v822, %v821
    %v838 = vpack.c.b16 %v824, %v823
    %v839 = vpack.c.b16 %v826, %v825
    %v840 = vpack.c.b16 %v828, %v827
    %v841 = vpack.c.b16 %v830, %v829
    %v842 = vpack.c.b16 %v832, %v831
    %v843 = vpack.c.b16 %v834, %v833
    %v844 = vpack.c.b16 %v836, %v835
    %853 = vmatprep.subr.bf16.mxu0 0
    %854 = vmatpush1.bf16.msra.mxu0 %v837
    %855 = vmatprep.subr.bf16.mxu0 0
    %856 = vmatpush1.bf16.msra.mxu0 %v838
    %857 = vmatprep.subr.bf16.mxu0 0
    %858 = vmatpush1.bf16.msra.mxu0 %v839
    %859 = vmatprep.subr.bf16.mxu0 0
    %860 = vmatpush1.bf16.msra.mxu0 %v840
    %861 = vmatprep.subr.bf16.mxu0 0
    %862 = vmatpush1.bf16.msra.mxu0 %v841
    %863 = vmatprep.subr.bf16.mxu0 0
    %864 = vmatpush1.bf16.msra.mxu0 %v842
    %865 = vmatprep.subr.bf16.mxu0 0
    %866 = vmatpush1.bf16.msra.mxu0 %v843
    %867 = vmatprep.subr.bf16.mxu0 0
    %868 = vmatpush1.bf16.msra.mxu0 %v844
    %869 = vmatprep.subr.bf16.mxu0 0
    %870 = vmatpush1.bf16.msra.mxu0 0
    %871 = vmatprep.subr.bf16.mxu0 0
    %872 = vmatpush1.bf16.msra.mxu0 0
    %873 = vmatprep.subr.bf16.mxu0 0
    %874 = vmatpush1.bf16.msra.mxu0 0
    %875 = vmatprep.subr.bf16.mxu0 0
    %876 = vmatpush1.bf16.msra.mxu0 0
    %877 = vmatprep.subr.bf16.mxu0 0
    %878 = vmatpush1.bf16.msra.mxu0 0
    %879 = vmatprep.subr.bf16.mxu0 0
    %880 = vmatpush1.bf16.msra.mxu0 0
    %881 = vmatprep.subr.bf16.mxu0 0
    %882 = vmatpush1.bf16.msra.mxu0 0
    %883 = vmatprep.subr.bf16.mxu0 0
    %884 = vmatpush1.bf16.msra.mxu0 0
    %885 = vmatprep.mubr.bf16.mxu0 0
    %886 = vmatmul.mubr.bf16.gmra.mrb[0].mxu0 %v781
    %v887 = vpop.f32.mrb[0].mxu0
    %v888 = vadd.f32 %v803, %v887
    %v889 = vpop.f32.mrb[0].mxu0
    %v890 = vpop.f32.mrb[0].mxu0
    %v891 = vpop.f32.mrb[0].mxu0
    %892 = vdwg.mxu0
    %v893 = vmax.f32 %v888, 0.0
    %v894 = vpack.c.bf16 %v893, %v893
    %v895 = vld [vmem:[%s5] sm:$0xf]
    %v896 = vld [vmem:[%s5 + $0x4] sm:$0xf]
    %v897 = vld [vmem:[%s5 + $0x8] sm:$0xf]
    %v898 = vld [vmem:[%s5 + $0xc] sm:$0xf]
    %v899 = vld [vmem:[%s5 + $0x10] sm:$0xf]
    %v900 = vld [vmem:[%s5 + $0x14] sm:$0xf]
    %v901 = vld [vmem:[%s5 + $0x18] sm:$0xf]
    %v902 = vld [vmem:[%s5 + $0x1c] sm:$0xf]
    %v903 = vld [vmem:[%s6] sm:$0x1]
    %v905 = vlaneseq
    %v906 = vshrl.u32 %v905, 7
    %v907 = vsub.s32 0, %v906
    %v908 = vrot.slane %v903, %v907
    %v918 = vunpack.c.l.b16 %v895
    %v919 = vunpack.c.l.b16 %v896
    %v920 = vunpack.c.l.b16 %v897
    %v921 = vunpack.c.l.b16 %v898
    %v922 = vunpack.c.l.b16 %v899
    %v923 = vunpack.c.l.b16 %v900
    %v924 = vunpack.c.l.b16 %v901
    %v925 = vunpack.c.l.b16 %v902
    %v926 = vpack.c.b16 %v919, %v918
    %v927 = vpack.c.b16 %v921, %v920
    %v928 = vpack.c.b16 %v923, %v922
    %v929 = vpack.c.b16 %v925, %v924
    %vm934 = vcmask 523264
    %v936 = vsel %vm934, %v894, 0
    %938 = vmatprep.subr.bf16.mxu0 0
    %939 = vmatpush1.bf16.msra.mxu0 %v926
    %940 = vmatprep.subr.bf16.mxu0 0
    %941 = vmatpush1.bf16.msra.mxu0 %v927
    %942 = vmatprep.subr.bf16.mxu0 0
    %943 = vmatpush1.bf16.msra.mxu0 %v928
    %944 = vmatprep.subr.bf16.mxu0 0
    %945 = vmatpush1.bf16.msra.mxu0 %v929
    %946 = vmatprep.subr.bf16.mxu0 0
    %947 = vmatpush1.bf16.msra.mxu0 0
    %948 = vmatprep.subr.bf16.mxu0 0
    %949 = vmatpush1.bf16.msra.mxu0 0
    %950 = vmatprep.subr.bf16.mxu0 0
    %951 = vmatpush1.bf16.msra.mxu0 0
    %952 = vmatprep.subr.bf16.mxu0 0
    %953 = vmatpush1.bf16.msra.mxu0 0
    %954 = vmatprep.subr.bf16.mxu0 0
    %955 = vmatpush1.bf16.msra.mxu0 0
    %956 = vmatprep.subr.bf16.mxu0 0
    %957 = vmatpush1.bf16.msra.mxu0 0
    %958 = vmatprep.subr.bf16.mxu0 0
    %959 = vmatpush1.bf16.msra.mxu0 0
    %960 = vmatprep.subr.bf16.mxu0 0
    %961 = vmatpush1.bf16.msra.mxu0 0
    %962 = vmatprep.subr.bf16.mxu0 0
    %963 = vmatpush1.bf16.msra.mxu0 0
    %964 = vmatprep.subr.bf16.mxu0 0
    %965 = vmatpush1.bf16.msra.mxu0 0
    %966 = vmatprep.subr.bf16.mxu0 0
    %967 = vmatpush1.bf16.msra.mxu0 0
    %968 = vmatprep.subr.bf16.mxu0 0
    %969 = vmatpush1.bf16.msra.mxu0 0
    %970 = vmatprep.mubr.bf16.mxu0 0
    %971 = vmatmul.mubr.bf16.gmra.mrb[0].mxu0 %v936
    %v972 = vpop.f32.mrb[0].mxu0
    %v973 = vadd.f32 %v908, %v972
    %v974 = vpop.f32.mrb[0].mxu0
    %v975 = vpop.f32.mrb[0].mxu0
    %v976 = vpop.f32.mrb[0].mxu0
    %977 = vdwg.mxu0
    %vm978 = vcmask 1041408
    %v979 = vsel %vm978, %v973, -inf
    %980 = vmax.xlane.f32.xlu0 %v979
    %v981 = vpop.xlane.xlu0 %980
    %v982 = vsub.f32 %v973, %v981
    %v983 = vmul.f32 %v982, 1.442695
    %v984 = vpow.pop %v983
    %v985 = vsel %vm978, %v984, 0.0
    %986 = vadd.xlane.f32.xlu0 %v985
    %v987 = vpop.xlane.xlu0 %986
    %v988 = vlog2.pop %v987
    %v989 = vmul.f32 %v988, 0.6931472
    %v990 = vadd.f32 %v981, %v989
    %v991 = vsub.f32 %v973, %v990
    %992 = vst [vmem:[#allocation5] sm:$0x3] %v991
    // Predicated region
    $region34: #{classifier_forward.1} parent=1 // pred_check
      _
    $region35: #{classifier_forward.1} parent=1 // pred_check_branch
      %994 = sbr.rel (0) target = $region37
    $region36: #{classifier_forward.1} parent=1 // pred_region
      %s996 = ssub.s32 32, 32
      %997 = vsyncadd [#allocation4], %s996
      %s999 = sshll.u32 [#allocation5], 4
      %s1000 = int_to_ptr.vmem [resolvable:$true] %s999
      %1002 = dma.vmem_to_hbm [thread:$0]  %s1000, 32, %s7, [#allocation4]
    $region37: #{classifier_forward.1} parent=1 // pred_fallthru
      _
    // Predicated region
    $region38: #{classifier_forward.1} parent=1 // pred_check
      _
    $region39: #{classifier_forward.1} parent=1 // pred_check_branch
      %1004 = sbr.rel (0) target = $region41
    $region40: #{classifier_forward.1} parent=1 // pred_region
      %1005 = dma.done [#allocation4], 32
    $region41: #{classifier_forward.1} parent=1 // pred_fallthru
      _
    %1006 = vsyncpa [#allocation3], 1
    %1007 = vsyncpa [#allocation4], 1

</llo_original>
